<compile_context>
chip_gen: v7x
topology: tpu7x:2x2x1
jax: 0.10.0
libtpu: 0.0.40
codegen_flags: <defaults>
</compile_context>

<pallas_src>
import math

import jax
import jax.numpy as jnp
from jax.experimental import pallas as pl
from jax.experimental.pallas import tpu as pltpu


_LANE = 128
_MIB = 1024 * 1024
# Double-buffered VMEM working-set budget; comfortably under v7x's 64 MiB/TC
# (v5e/v6e have 128 MiB, so this is safe on every generation).
_VMEM_WORKING_SET_BUDGET = 40 * _MIB


def _round_up(x, m):
    return ((x + m - 1) // m) * m


def _cdiv(a, b):
    return (a + b - 1) // b


def _fit_tile(dim, max_tile, align):
    """Largest tile <= ~max_tile, aligned to `align`, minimizing edge padding."""
    max_tile = max(align, _round_up(min(max_tile, dim), align))
    n_tiles = _cdiv(dim, max_tile)
    return _round_up(_cdiv(dim, n_tiles), align)


def _vmem_capacity_bytes():
    try:
        return pltpu.get_tpu_info().vmem_capacity_bytes
    except Exception:
        return 64 * _MIB  # conservative fallback: v7x per-core VMEM


# ----------------------------- kernels ---------------------------------------


def _linear_kernel_single(x_ref, w_ref, o_ref):
    # Whole reduction in one step: out tile written exactly once, no accumulator.
    o_ref[...] = jnp.dot(
        x_ref[...], w_ref[...], preferred_element_type=jnp.float32
    ).astype(o_ref.dtype)


def _linear_kernel_kloop_f32(x_ref, w_ref, o_ref):
    # f32 output: accumulate directly into the resident output tile (no scratch,
    # no finalize copy — helps the single-store-slot v5e too).
    @pl.when(pl.program_id(2) == 0)
    def _init():
        o_ref[...] = jnp.zeros_like(o_ref)

    o_ref[...] += jnp.dot(x_ref[...], w_ref[...], preferred_element_type=jnp.float32)


def _linear_kernel_kloop_acc(x_ref, w_ref, o_ref, acc_ref):
    # Narrow output dtype: f32 VMEM accumulator, single cast at the end.
    @pl.when(pl.program_id(2) == 0)
    def _init():
        acc_ref[...] = jnp.zeros_like(acc_ref)

    acc_ref[...] += jnp.dot(x_ref[...], w_ref[...], preferred_element_type=jnp.float32)

    @pl.when(pl.program_id(2) == pl.num_programs(2) - 1)
    def _finalize():
        o_ref[...] = acc_ref[...].astype(o_ref.dtype)


# ----------------------------- wrapper ----------------------------------------


def simple_linear_forward(
    x,
    weight,
    *,
    tm=None,
    tn=None,
    tk=None,
    compute_dtype=None,
    allow_xla_fast_path=True,
):
    """nn.Linear(input_dim, output_dim, bias=False): out = x @ weight.T.

    x:      (B, input_dim)
    weight: (output_dim, input_dim)   -- PyTorch layout (NOT pre-transposed).

    Pass compute_dtype=jnp.bfloat16 for ~2x MXU throughput and half the HBM
    traffic (accumulation stays f32).  Default keeps the module's f32 numerics.
    """
    M, K = x.shape
    N, Kw = weight.shape
    assert K == Kw, (K, Kw)
    out_dtype = x.dtype
    if compute_dtype is None:
        compute_dtype = x.dtype  # preserve module semantics by default
    compute_dtype = jnp.dtype(compute_dtype)
    in_bytes = compute_dtype.itemsize
    out_bytes = jnp.dtype(out_dtype).itemsize

    # Small-problem fast path: at the module's own 8x32x16 size the MXU runs at
    # <=8/256 row occupancy and pallas_call + pad/slice overhead dominates.
    if allow_xla_fast_path and (M * N * K) <= 64 * 128 * 128:
        return jnp.dot(
            x.astype(compute_dtype),
            weight.astype(compute_dtype).T,
            preferred_element_type=jnp.float32,
        ).astype(out_dtype)

    sublane = max(8, 32 // in_bytes)  # 8 for f32, 16 for bf16

    # --- tile selection (alignment enforced even for caller-supplied sizes) ---
    tm = _fit_tile(M, 512 if tm is None else _round_up(tm, sublane), sublane)
    tn = _fit_tile(N, 512 if tn is None else _round_up(tn, _LANE), _LANE)
    # Collapse the whole reduction into one step when it fits the VMEM budget.
    tk = _fit_tile(
        K, _round_up(K, _LANE) if tk is None else _round_up(tk, _LANE), _LANE
    )

    def working_set(tk_):
        ws = 2 * (tm * tk_ + tk_ * tn) * in_bytes + 2 * tm * tn * out_bytes
        if _cdiv(K, tk_) > 1 and out_dtype != jnp.float32:
            ws += tm * tn * 4  # f32 accumulator scratch
        return ws

    while working_set(tk) > _VMEM_WORKING_SET_BUDGET and tk > _LANE:
        tk = _fit_tile(K, max(_LANE, tk // 2), _LANE)

    Mp, Np, Kp = _round_up(M, tm), _round_up(N, tn), _round_up(K, tk)
    k_tiles = Kp // tk

    # --- operand prep (outside the kernel; weight transform is amortizable) ---
    # TODO(synk): hoist the weight transpose/pad/cast to parameter-init time so
    # it is not re-done per forward call.
    xc = x.astype(compute_dtype)
    wt = weight.astype(compute_dtype).T  # (K, N): kernel needs no XLU transpose
    if (Mp, Kp) != (M, K):
        xc = jnp.pad(xc, ((0, Mp - M), (0, Kp - K)))
    if (Kp, Np) != (K, N):
        wt = jnp.pad(wt, ((0, Kp - K), (0, Np - N)))

    # --- pallas_call ----------------------------------------------------------
    cost = pl.CostEstimate(
        flops=2 * Mp * Kp * Np,
        bytes_accessed=(
            in_bytes * (Mp * Kp * (Np // tn) + Kp * Np * (Mp // tm))
            + out_bytes * Mp * Np
        ),
        transcendentals=0,
    )
    vmem_limit = int(
        min(
            max(32 * _MIB, working_set(tk) + 8 * _MIB),
            int(0.85 * _vmem_capacity_bytes()),
        )
    )

    if k_tiles == 1:
        grid = (Mp // tm, Np // tn)
        kernel = _linear_kernel_single
        in_specs = [
            pl.BlockSpec((tm, tk), lambda i, j: (i, 0)),
            pl.BlockSpec((tk, tn), lambda i, j: (0, j)),
        ]
        out_specs = pl.BlockSpec((tm, tn), lambda i, j: (i, j))
        scratch_shapes = []
        dim_sem = ("parallel", "parallel")
    else:
        grid = (Mp // tm, Np // tn, k_tiles)
        in_specs = [
            pl.BlockSpec((tm, tk), lambda i, j, k: (i, k)),
            pl.BlockSpec((tk, tn), lambda i, j, k: (k, j)),
        ]
        out_specs = pl.BlockSpec((tm, tn), lambda i, j, k: (i, j))
        dim_sem = ("parallel", "parallel", "arbitrary")
        if out_dtype == jnp.float32:
            kernel = _linear_kernel_kloop_f32
            scratch_shapes = []
        else:
            kernel = _linear_kernel_kloop_acc
            scratch_shapes = [pltpu.VMEM((tm, tn), jnp.float32)]

    out = pl.pallas_call(
        kernel,
        out_shape=jax.ShapeDtypeStruct((Mp, Np), out_dtype),
        grid_spec=pltpu.PrefetchScalarGridSpec(
            num_scalar_prefetch=0,
            grid=grid,
            in_specs=in_specs,
            out_specs=out_specs,
            scratch_shapes=scratch_shapes,
        ),
        compiler_params=pltpu.CompilerParams(
            dimension_semantics=dim_sem,
            vmem_limit_bytes=vmem_limit,
        ),
        cost_estimate=cost,
    )(xc, wt)

    if (Mp, Np) != (M, N):
        out = out[:M, :N]
    return out


if __name__ == "__main__":
    key = jax.random.PRNGKey(0)
    kx, kw, kx2, kw2 = jax.random.split(key, 4)

    # Shapes implied by the module: SimpleLinearModel(input_dim=32, output_dim=16), batch=8.
    B, input_dim, output_dim = 8, 32, 16
    x = jax.random.normal(kx, (B, input_dim), dtype=jnp.float32)
    bound = 1.0 / math.sqrt(input_dim)
    weight = jax.random.uniform(
        kw, (output_dim, input_dim), dtype=jnp.float32, minval=-bound, maxval=bound
    )
    ref = x @ weight.T

    # 1) Pallas kernel at the module's shapes (fast path disabled to exercise it).
    out = jax.block_until_ready(
        simple_linear_forward(x, weight, allow_xla_fast_path=False)
    )
    assert out.shape == (B, output_dim)
    assert jnp.allclose(out, ref, atol=1e-5, rtol=1e-5)

    # 2) Small-problem fast path (same semantics, no pallas_call overhead).
    out_fast = jax.block_until_ready(simple_linear_forward(x, weight))
    assert jnp.allclose(out_fast, ref, atol=1e-5, rtol=1e-5)

    # 3) Larger, non-tile-aligned shapes; default tiling collapses K to one step.
    M2, K2, N2 = 384, 1152, 272
    x2 = jax.random.normal(kx2, (M2, K2), dtype=jnp.float32)
    w2 = jax.random.normal(kw2, (N2, K2), dtype=jnp.float32) * 0.02
    ref2 = x2 @ w2.T
    out2 = jax.block_until_ready(simple_linear_forward(x2, w2))
    assert out2.shape == (M2, N2)
    assert jnp.allclose(out2, ref2, atol=1e-2, rtol=1e-2)

    # 4) Multi-step K reduction (f32 output accumulates directly in o_ref).
    out3 = jax.block_until_ready(simple_linear_forward(x2, w2, tk=512))
    assert jnp.allclose(out3, ref2, atol=1e-2, rtol=1e-2)

    # 5) bf16 inputs/outputs with an f32 scratch accumulator (multi-step K).
    x2b, w2b = x2.astype(jnp.bfloat16), w2.astype(jnp.bfloat16)
    ref4 = jnp.dot(x2b.astype(jnp.float32), w2b.astype(jnp.float32).T)
    out4 = jax.block_until_ready(simple_linear_forward(x2b, w2b, tk=512))
    assert out4.dtype == jnp.bfloat16
    assert jnp.allclose(out4.astype(jnp.float32), ref4, atol=5e-2, rtol=5e-2)

    print("KERNEL_OK")
</pallas_src>

<mosaic_0001>
module attributes {stable_mosaic.version = 11 : i64} {
  func.func @_linear_kernel_single(%arg0: i32, %arg1: i32, %arg2: memref<8x128xf32, #tpu.memory_space<vmem>>, %arg3: memref<128x128xf32, #tpu.memory_space<vmem>>, %arg4: memref<8x128xf32, #tpu.memory_space<vmem>>) attributes {dimension_semantics = [#tpu.dimension_semantics<parallel>, #tpu.dimension_semantics<parallel>], iteration_bounds = array<i64: 1, 1>, scalar_prefetch = 0 : i64, scratch_operands = 0 : i64, tpu.core_type = #tpu.core_type<tc>, window_params = [{transform_indices = @transform_0, window_bounds = array<i64: 8, 128>}, {transform_indices = @transform_1, window_bounds = array<i64: 128, 128>}, {transform_indices = @transform_2, window_bounds = array<i64: 8, 128>}]} {
    %c0 = arith.constant 0 : index
    %c0_0 = arith.constant 0 : index
    %0 = vector.load %arg2[%c0, %c0_0] : memref<8x128xf32, #tpu.memory_space<vmem>>, vector<8x128xf32>
    %c0_1 = arith.constant 0 : index
    %c0_2 = arith.constant 0 : index
    %1 = vector.load %arg3[%c0_1, %c0_2] : memref<128x128xf32, #tpu.memory_space<vmem>>, vector<128x128xf32>
    %cst = arith.constant dense<0.000000e+00> : vector<8x128xf32>
    %2 = tpu.matmul %0, %1, %cst {dimension_numbers = #tpu.dot_dimension_numbers<[1], [0], [0], [1], [0, 0, 1, 1], [], []>} : vector<8x128xf32>, vector<128x128xf32>, vector<8x128xf32> -> vector<8x128xf32>
    %c0_3 = arith.constant 0 : index
    %c0_4 = arith.constant 0 : index
    %3 = vector.load %arg4[%c0_3, %c0_4] : memref<8x128xf32, #tpu.memory_space<vmem>>, vector<8x128xf32>
    tpu.vector_store %arg4[%c0_3, %c0_4], %2 {strides = array<i32>} : memref<8x128xf32, #tpu.memory_space<vmem>>, vector<8x128xf32>,
    return
  }
  func.func @transform_0(%arg0: i32, %arg1: i32) -> (i32, i32) {
    %c0_i32 = arith.constant 0 : i32
    %c0_i32_0 = arith.constant 0 : i32
    return %arg0, %c0_i32 : i32, i32
  }
  func.func @transform_1(%arg0: i32, %arg1: i32) -> (i32, i32) {
    %c0_i32 = arith.constant 0 : i32
    %c0_i32_0 = arith.constant 0 : i32
    return %c0_i32, %arg1 : i32, i32
  }
  func.func @transform_2(%arg0: i32, %arg1: i32) -> (i32, i32) {
    %c0_i32 = arith.constant 0 : i32
    return %arg0, %arg1 : i32, i32
  }
}

</mosaic_0001>

<llo_original>
// kernel: tpu_custom_call.1
$region0: #{tpu_custom_call.1}
  #allocation0 [shape = 'u32[]', space=smem, size = 0x4, offset = 0x4, fixed_abs, tag = 'smem constant byte address 0x4 - core index']
  #allocation1 [shape = 'u32[144,128]{1,0:T(1,128)}', space=vmem, size = 0x12000, scoped, tag = 'internal scratch']
  %s0 = inlined_call_operand.hbm [shape: f32[8,128], index: 0, kind: input, shape index: {}]
  %s1 = inlined_call_operand.hbm [shape: f32[128,128], index: 1, kind: input, shape index: {}]
  %s2 = inlined_call_operand.hbm [shape: f32[8,128], index: 2, kind: output, shape index: {}]
  %s3 = sld [smem:[#allocation0]]
  $region26: #{tpu_custom_call.1} parent=0
    _
  %s5 = ssub.s32 1, %s3
  %s6 = scalar_select 0, %s5, %s3
  $region1: #{tpu_custom_call.1} parent=0
    #allocation2 [shape = 'u8[4096]{0}', space=vmem, size = 0x1000, scoped, tag = 'input window, operand 0, single buffered']
    #allocation3 [shape = 's32[1]{0}', space=sflag, size = 0x4, scoped, tag = 'scoped memory for tpu_custom_call.1']
    #allocation4 [shape = 's32[1]{0}', space=sflag, size = 0x4, scoped, tag = 'scoped memory for tpu_custom_call.1']
    #allocation5 [shape = 'u8[65536]{0}', space=vmem, size = 0x10000, scoped, tag = 'input window, operand 1, single buffered']
    #allocation6 [shape = 's32[1]{0}', space=sflag, size = 0x4, scoped, tag = 'scoped memory for tpu_custom_call.1']
    #allocation7 [shape = 'u8[4096]{0}', space=vmem, size = 0x1000, scoped, tag = 'output window, operand 0, single buffered']
    %7 = vsyncpa [#allocation3], 0
    %8 = vsyncpa [#allocation6], 0
    %9 = vsyncpa [#allocation4], 0
    // Predicated region
    $region2: #{tpu_custom_call.1} parent=1 // pred_check
      _
    $region3: #{tpu_custom_call.1} parent=1 // pred_check_branch
      %11 = sbr.rel (0) target = $region5
    $region4: #{tpu_custom_call.1} parent=1 // pred_region
      %s13 = ssub.s32 128, 128
      %14 = vsyncadd [#allocation3], %s13
      %s16 = sshll.u32 [#allocation2], 4
      %s17 = int_to_ptr.vmem [resolvable:$true] %s16
      %19 = dma.hbm_to_vmem [thread:$0]  %s0, 128, %s17, [#allocation3]
    $region5: #{tpu_custom_call.1} parent=1 // pred_fallthru
      _
    // Predicated region
    $region6: #{tpu_custom_call.1} parent=1 // pred_check
      _
    $region7: #{tpu_custom_call.1} parent=1 // pred_check_branch
      %21 = sbr.rel (0) target = $region9
    $region8: #{tpu_custom_call.1} parent=1 // pred_region
      %s23 = ssub.s32 2048, 2048
      %24 = vsyncadd [#allocation6], %s23
      %s25 = sshll.u32 [#allocation5], 4
      %s26 = int_to_ptr.vmem [resolvable:$true] %s25
      %31 = dma.hbm_to_vmem [thread:$0]  %s1, 2048, %s26, [#allocation6], 128, 128, 8
    $region9: #{tpu_custom_call.1} parent=1 // pred_fallthru
      _
    // Predicated region
    $region10: #{tpu_custom_call.1} parent=1 // pred_check
      _
    $region11: #{tpu_custom_call.1} parent=1 // pred_check_branch
      %33 = sbr.rel (0) target = $region13
    $region12: #{tpu_custom_call.1} parent=1 // pred_region
      %34 = dma.done [#allocation3], 128
    $region13: #{tpu_custom_call.1} parent=1 // pred_fallthru
      _
    // Predicated region
    $region14: #{tpu_custom_call.1} parent=1 // pred_check
      _
    $region15: #{tpu_custom_call.1} parent=1 // pred_check_branch
      %36 = sbr.rel (0) target = $region17
    $region16: #{tpu_custom_call.1} parent=1 // pred_region
      %37 = dma.done [#allocation6], 2048
    $region17: #{tpu_custom_call.1} parent=1 // pred_fallthru
      _
    %v38 = vld [vmem:[#allocation2] sm:$0xff]
    %v39 = vld [vmem:[#allocation5] sm:$0xff]
    %v40 = vld [vmem:[#allocation5 + $0x8] sm:$0xff]
    %v41 = vld [vmem:[#allocation5 + $0x10] sm:$0xff]
    %v42 = vld [vmem:[#allocation5 + $0x18] sm:$0xff]
    %v43 = vld [vmem:[#allocation5 + $0x20] sm:$0xff]
    %v44 = vld [vmem:[#allocation5 + $0x28] sm:$0xff]
    %v45 = vld [vmem:[#allocation5 + $0x30] sm:$0xff]
    %v46 = vld [vmem:[#allocation5 + $0x38] sm:$0xff]
    %v47 = vld [vmem:[#allocation5 + $0x40] sm:$0xff]
    %v48 = vld [vmem:[#allocation5 + $0x48] sm:$0xff]
    %v49 = vld [vmem:[#allocation5 + $0x50] sm:$0xff]
    %v50 = vld [vmem:[#allocation5 + $0x58] sm:$0xff]
    %v51 = vld [vmem:[#allocation5 + $0x60] sm:$0xff]
    %v52 = vld [vmem:[#allocation5 + $0x68] sm:$0xff]
    %v53 = vld [vmem:[#allocation5 + $0x70] sm:$0xff]
    %v54 = vld [vmem:[#allocation5 + $0x78] sm:$0xff]
    %55 = vmatprep.subr.mxu0 0.0
    %56 = vmatpush1.msra.mxu0 %v39
    %57 = vmatprep.subr.mxu0 0.0
    %58 = vmatpush1.msra.mxu0 %v40
    %59 = vmatprep.subr.mxu0 0.0
    %60 = vmatpush1.msra.mxu0 %v41
    %61 = vmatprep.subr.mxu0 0.0
    %62 = vmatpush1.msra.mxu0 %v42
    %63 = vmatprep.subr.mxu0 0.0
    %64 = vmatpush1.msra.mxu0 %v43
    %65 = vmatprep.subr.mxu0 0.0
    %66 = vmatpush1.msra.mxu0 %v44
    %67 = vmatprep.subr.mxu0 0.0
    %68 = vmatpush1.msra.mxu0 %v45
    %69 = vmatprep.subr.mxu0 0.0
    %70 = vmatpush1.msra.mxu0 %v46
    %71 = vmatprep.subr.mxu0 0.0
    %72 = vmatpush1.msra.mxu0 %v47
    %73 = vmatprep.subr.mxu0 0.0
    %74 = vmatpush1.msra.mxu0 %v48
    %75 = vmatprep.subr.mxu0 0.0
    %76 = vmatpush1.msra.mxu0 %v49
    %77 = vmatprep.subr.mxu0 0.0
    %78 = vmatpush1.msra.mxu0 %v50
    %79 = vmatprep.subr.mxu0 0.0
    %80 = vmatpush1.msra.mxu0 %v51
    %81 = vmatprep.subr.mxu0 0.0
    %82 = vmatpush1.msra.mxu0 %v52
    %83 = vmatprep.subr.mxu0 0.0
    %84 = vmatpush1.msra.mxu0 %v53
    %85 = vmatprep.subr.mxu0 0.0
    %86 = vmatpush1.msra.mxu0 %v54
    %87 = vmatprep.subr.mxu0 0.0
    %88 = vmatpush1.msra.mxu0 0.0
    %89 = vmatprep.subr.mxu0 0.0
    %90 = vmatpush1.msra.mxu0 0.0
    %91 = vmatprep.subr.mxu0 0.0
    %92 = vmatpush1.msra.mxu0 0.0
    %93 = vmatprep.subr.mxu0 0.0
    %94 = vmatpush1.msra.mxu0 0.0
    %95 = vmatprep.subr.mxu0 0.0
    %96 = vmatpush1.msra.mxu0 0.0
    %97 = vmatprep.subr.mxu0 0.0
    %98 = vmatpush1.msra.mxu0 0.0
    %99 = vmatprep.subr.mxu0 0.0
    %100 = vmatpush1.msra.mxu0 0.0
    %101 = vmatprep.subr.mxu0 0.0
    %102 = vmatpush1.msra.mxu0 0.0
    %103 = vmatprep.subr.mxu0 0.0
    %104 = vmatpush1.msra.mxu0 0.0
    %105 = vmatprep.subr.mxu0 0.0
    %106 = vmatpush1.msra.mxu0 0.0
    %107 = vmatprep.subr.mxu0 0.0
    %108 = vmatpush1.msra.mxu0 0.0
    %109 = vmatprep.subr.mxu0 0.0
    %110 = vmatpush1.msra.mxu0 0.0
    %111 = vmatprep.subr.mxu0 0.0
    %112 = vmatpush1.msra.mxu0 0.0
    %113 = vmatprep.subr.mxu0 0.0
    %114 = vmatpush1.msra.mxu0 0.0
    %115 = vmatprep.subr.mxu0 0.0
    %116 = vmatpush1.msra.mxu0 0.0
    %117 = vmatprep.subr.mxu0 0.0
    %118 = vmatpush1.msra.mxu0 0.0
    %119 = vmatprep.mubr.f32.mxu0 0.0
    %120 = vmatmul.mubr.f32.gmra.mrb[0].mxu0 %v38
    %v121 = vpop.f32.mrb[0].mxu0
    %v122 = vadd.f32 0.0, %v121
    %v123 = vpop.f32.mrb[0].mxu0
    %124 = vdwg.mxu0
    %125 = vst [vmem:[#allocation7] sm:$0xff] %v122
    // Predicated region
    $region18: #{tpu_custom_call.1} parent=1 // pred_check
      _
    $region19: #{tpu_custom_call.1} parent=1 // pred_check_branch
      %127 = sbr.rel (0) target = $region21
    $region20: #{tpu_custom_call.1} parent=1 // pred_region
      %s129 = ssub.s32 128, 128
      %130 = vsyncadd [#allocation4], %s129
      %s132 = sshll.u32 [#allocation7], 4
      %s133 = int_to_ptr.vmem [resolvable:$true] %s132
      %135 = dma.vmem_to_hbm [thread:$0]  %s133, 128, %s2, [#allocation4]
    $region21: #{tpu_custom_call.1} parent=1 // pred_fallthru
      _
    // Predicated region
    $region22: #{tpu_custom_call.1} parent=1 // pred_check
      _
    $region23: #{tpu_custom_call.1} parent=1 // pred_check_branch
      %137 = sbr.rel (0) target = $region25
    $region24: #{tpu_custom_call.1} parent=1 // pred_region
      %138 = dma.done [#allocation4], 128
    $region25: #{tpu_custom_call.1} parent=1 // pred_fallthru
      _
    %139 = vsyncpa [#allocation3], 1
    %140 = vsyncpa [#allocation6], 1
    %141 = vsyncpa [#allocation4], 1

</llo_original>
